<compile_context>
chip_gen: v7x
topology: tpu7x:2x2x1
jax: 0.10.0
libtpu: 0.0.40
codegen_flags: <defaults>
</compile_context>

<pallas_src>
import jax
import jax.numpy as jnp
from jax import lax
from jax.experimental import pallas as pl
from jax.experimental.pallas import tpu as pltpu

_TILE_ROWS_MAX = 2048  # rows per grid step; sweep {1024, 2048, 4096} per review.


def _cdiv(a, b):
    return -(-a // b)


def _round_up(a, b):
    return _cdiv(a, b) * b


def _value_mlp_kernel(x_ref, w1_ref, b1_ref, w2_ref, b2_ref, w3_ref, b3_ref, o_ref):
    # x arrives already in the compute dtype (f32, or bf16 on v6e/v7x serving).
    x = x_ref[...]                                                    # (tm, in)
    h1 = jnp.dot(x, w1_ref[...], preferred_element_type=jnp.float32) + b1_ref[...]
    h1 = jnp.maximum(h1, 0.0)                                         # f32 bias+ReLU
    h2 = jnp.dot(h1.astype(w2_ref.dtype), w2_ref[...],
                 preferred_element_type=jnp.float32) + b2_ref[...]
    h2 = jnp.maximum(h2, 0.0)
    # Final layer (out dim = 1): contract (1, H) with (tm, H) on the MXU ->
    # (1, tm), lane-dense straight out of the MXU (no XLU relayout, no masked
    # column stores).  b3 is a scalar read from SMEM.
    v = lax.dot_general(w3_ref[...], h2.astype(w3_ref.dtype),
                        dimension_numbers=(((1,), (1,)), ((), ())),
                        preferred_element_type=jnp.float32) + b3_ref[0, 0]
    o_ref[...] = v.astype(o_ref.dtype)


def prepare_params(torch_layout_params, compute_dtype=jnp.float32):
    """One-time layout conversion (NOT the hot path).  PyTorch F.linear computes
    y = x @ W^T + b, so weights are stored pre-transposed as (in, out), biases as
    (1, out) in f32, w3 as a (1, hidden) row, b3 as a (1, 1) scalar for SMEM.
    Use compute_dtype=jnp.bfloat16 on v6e/v7x serving; keep f32 on v5e."""
    p = torch_layout_params
    return {
        "w1t": p["l1.weight"].T.astype(compute_dtype),                 # (in, hidden)
        "b1": p["l1.bias"].reshape(1, -1).astype(jnp.float32),         # (1, hidden)
        "w2t": p["l2.weight"].T.astype(compute_dtype),                 # (hidden, hidden)
        "b2": p["l2.bias"].reshape(1, -1).astype(jnp.float32),         # (1, hidden)
        "w3row": p["l3.weight"].reshape(1, -1).astype(compute_dtype),  # (1, hidden)
        "b3": p["l3.bias"].reshape(1, 1).astype(jnp.float32),          # (1, 1) scalar
    }


def _choose_tiling(batch, tile_rows_max):
    """Rows-per-step and grid size.  No padding of x is ever required:
      * 1 step for small batches -> block == full array (any size legal).
      * otherwise tm is a multiple of 128 (lane-dense out block) and the grid is
        a cdiv grid whose last block is partial (masked on writeback)."""
    steps = _cdiv(batch, tile_rows_max)
    if batch >= 256:
        steps = max(steps, 2)   # v7x: give both TensorCores a >=128-row tile.
    if steps == 1:
        tm = batch
    else:
        tm = _round_up(_cdiv(batch, steps), 128)
    return tm, _cdiv(batch, tm)


def value_network_forward(x_tuple, params, *, tile_rows=_TILE_ROWS_MAX):
    """Mirrors ValueNetwork.forward: x_tuple = (x, (hx, cx)); returns (v, (hx, cx))."""
    x, (hx, cx) = x_tuple
    batch, input_dim = x.shape
    out_dtype = x.dtype

    compute_dtype = params["w1t"].dtype
    if x.dtype != compute_dtype:
        # Ideally the producer already emits activations in compute_dtype
        # (halves the dominant x HBM stream on v6e/v7x); cast here otherwise.
        x = x.astype(compute_dtype)

    tm, grid_steps = _choose_tiling(batch, tile_rows)

    # Constant block index => array stays VMEM-resident across all grid steps.
    def _resident(shape):
        return pl.BlockSpec(shape, lambda i: (0, 0))

    out = pl.pallas_call(
        _value_mlp_kernel,
        out_shape=jax.ShapeDtypeStruct((1, batch), out_dtype),
        grid=(grid_steps,),
        in_specs=[
            pl.BlockSpec((tm, input_dim), lambda i: (i, 0)),      # streamed x tile
            _resident(params["w1t"].shape),
            _resident(params["b1"].shape),
            _resident(params["w2t"].shape),
            _resident(params["b2"].shape),
            _resident(params["w3row"].shape),
            pl.BlockSpec(memory_space=pltpu.MemorySpace.SMEM),    # scalar b3
        ],
        # Lane-dense output slab: block (1, tm) along the lane axis.
        out_specs=pl.BlockSpec((1, tm), lambda i: (0, i)),
        compiler_params=pltpu.CompilerParams(
            dimension_semantics=("parallel",),                    # 2 TCs on v7x
        ),
    )(x, params["w1t"], params["b1"], params["w2t"], params["b2"],
      params["w3row"], params["b3"])

    v = out.reshape(batch, 1)
    return (v, (hx, cx))


def init_params(key, input_dim, n_hidden, dtype=jnp.float32):
    """Deterministic synthetic init in PyTorch layout (stands in for weight_init)."""
    ks = jax.random.split(key, 6)

    def lin(kw, kb, fan_in, fan_out):
        bound = 1.0 / jnp.sqrt(fan_in)
        w = jax.random.uniform(kw, (fan_out, fan_in), dtype, -bound, bound)
        b = jax.random.uniform(kb, (fan_out,), dtype, -bound, bound)
        return w, b

    w1, b1 = lin(ks[0], ks[1], input_dim, n_hidden)
    w2, b2 = lin(ks[2], ks[3], n_hidden, n_hidden)
    w3, b3 = lin(ks[4], ks[5], n_hidden, 1)
    return {"l1.weight": w1, "l1.bias": b1,
            "l2.weight": w2, "l2.bias": b2,
            "l3.weight": w3, "l3.bias": b3}


if __name__ == "__main__":
    input_dim, n_hidden = 16, 32
    key = jax.random.PRNGKey(0)
    kx, kh, kc, kp, kx2 = jax.random.split(key, 5)

    torch_params = init_params(kp, input_dim, n_hidden)
    # One-time layout prep.  For v6e/v7x serving pass compute_dtype=jnp.bfloat16
    # (and loosen the tolerance check accordingly).
    params = prepare_params(torch_params, compute_dtype=jnp.float32)

    def reference(xr):
        h1 = jax.nn.relu(xr @ torch_params["l1.weight"].T + torch_params["l1.bias"])
        h2 = jax.nn.relu(h1 @ torch_params["l2.weight"].T + torch_params["l2.bias"])
        return h2 @ torch_params["l3.weight"].T + torch_params["l3.bias"]

    # --- module-consistent tiny shape: batch=2 (single-step grid, full-dim blocks) ---
    batch = 2
    x = jax.random.normal(kx, (batch, input_dim), jnp.float32)
    hx = jax.random.normal(kh, (batch, n_hidden), jnp.float32)
    cx = jax.random.normal(kc, (batch, n_hidden), jnp.float32)

    (v, (hx_out, cx_out)) = value_network_forward((x, (hx, cx)), params)
    jax.block_until_ready(v)
    assert v.shape == (batch, 1)
    assert (hx_out is hx) and (cx_out is cx)
    assert jnp.allclose(v, reference(x), atol=1e-4), "mismatch vs reference (batch=2)"

    # --- multi-step grid: exercises the parallel 2-step grid, lane-dense out slab
    #     and the partial (masked) last block with no wrapper-side padding. ---
    batch2 = 500
    x2 = jax.random.normal(kx2, (batch2, input_dim), jnp.float32)
    (v2, _) = value_network_forward((x2, (hx, cx)), params)
    jax.block_until_ready(v2)
    assert v2.shape == (batch2, 1)
    assert jnp.allclose(v2, reference(x2), atol=1e-4), "mismatch vs reference (batch=500)"

    print("KERNEL_OK")
</pallas_src>

<mosaic_0001>
module attributes {stable_mosaic.version = 11 : i64} {
  func.func @_value_mlp_kernel(%arg0: i32, %arg1: memref<2x16xf32, #tpu.memory_space<vmem>>, %arg2: memref<16x32xf32, #tpu.memory_space<vmem>>, %arg3: memref<1x32xf32, #tpu.memory_space<vmem>>, %arg4: memref<32x32xf32, #tpu.memory_space<vmem>>, %arg5: memref<1x32xf32, #tpu.memory_space<vmem>>, %arg6: memref<1x32xf32, #tpu.memory_space<vmem>>, %arg7: memref<1x1xf32, #tpu.memory_space<smem>>, %arg8: memref<1x2xf32, #tpu.memory_space<vmem>>) attributes {dimension_semantics = [#tpu.dimension_semantics<parallel>], iteration_bounds = array<i64: 1>, scalar_prefetch = 0 : i64, scratch_operands = 0 : i64, tpu.core_type = #tpu.core_type<tc>, window_params = [{transform_indices = @transform_0, window_bounds = array<i64: 2, 16>}, {pipeline_mode = #tpu.pipeline_mode<synchronous>, transform_indices = @transform_1, window_bounds = array<i64: 16, 32>}, {pipeline_mode = #tpu.pipeline_mode<synchronous>, transform_indices = @transform_2, window_bounds = array<i64: 1, 32>}, {pipeline_mode = #tpu.pipeline_mode<synchronous>, transform_indices = @transform_3, window_bounds = array<i64: 32, 32>}, {pipeline_mode = #tpu.pipeline_mode<synchronous>, transform_indices = @transform_4, window_bounds = array<i64: 1, 32>}, {pipeline_mode = #tpu.pipeline_mode<synchronous>, transform_indices = @transform_5, window_bounds = array<i64: 1, 32>}, {transform_indices = @transform_6, window_bounds = array<i64: 1, 1>}, {transform_indices = @transform_7, window_bounds = array<i64: 1, 2>}]} {
    %c0 = arith.constant 0 : index
    %c0_0 = arith.constant 0 : index
    %0 = vector.load %arg1[%c0, %c0_0] : memref<2x16xf32, #tpu.memory_space<vmem>>, vector<2x16xf32>
    %c0_1 = arith.constant 0 : index
    %c0_2 = arith.constant 0 : index
    %1 = vector.load %arg2[%c0_1, %c0_2] : memref<16x32xf32, #tpu.memory_space<vmem>>, vector<16x32xf32>
    %cst = arith.constant dense<0.000000e+00> : vector<2x32xf32>
    %2 = tpu.matmul %0, %1, %cst {dimension_numbers = #tpu.dot_dimension_numbers<[1], [0], [0], [1], [0, 0, 1, 1], [], []>} : vector<2x16xf32>, vector<16x32xf32>, vector<2x32xf32> -> vector<2x32xf32>
    %c0_3 = arith.constant 0 : index
    %c0_4 = arith.constant 0 : index
    %3 = vector.load %arg3[%c0_3, %c0_4] : memref<1x32xf32, #tpu.memory_space<vmem>>, vector<1x32xf32>
    %4 = vector.broadcast %3 : vector<1x32xf32> to vector<2x32xf32>
    %5 = arith.addf %2, %4 : vector<2x32xf32>
    %cst_5 = arith.constant 0.000000e+00 : f32
    %6 = vector.broadcast %cst_5 : f32 to vector<2x32xf32>
    %7 = arith.maximumf %5, %6 : vector<2x32xf32>
    %c0_6 = arith.constant 0 : index
    %c0_7 = arith.constant 0 : index
    %8 = vector.load %arg4[%c0_6, %c0_7] : memref<32x32xf32, #tpu.memory_space<vmem>>, vector<32x32xf32>
    %cst_8 = arith.constant dense<0.000000e+00> : vector<2x32xf32>
    %9 = tpu.matmul %7, %8, %cst_8 {dimension_numbers = #tpu.dot_dimension_numbers<[1], [0], [0], [1], [0, 0, 1, 1], [], []>} : vector<2x32xf32>, vector<32x32xf32>, vector<2x32xf32> -> vector<2x32xf32>
    %c0_9 = arith.constant 0 : index
    %c0_10 = arith.constant 0 : index
    %10 = vector.load %arg5[%c0_9, %c0_10] : memref<1x32xf32, #tpu.memory_space<vmem>>, vector<1x32xf32>
    %11 = vector.broadcast %10 : vector<1x32xf32> to vector<2x32xf32>
    %12 = arith.addf %9, %11 : vector<2x32xf32>
    %cst_11 = arith.constant 0.000000e+00 : f32
    %13 = vector.broadcast %cst_11 : f32 to vector<2x32xf32>
    %14 = arith.maximumf %12, %13 : vector<2x32xf32>
    %c0_12 = arith.constant 0 : index
    %c0_13 = arith.constant 0 : index
    %15 = vector.load %arg6[%c0_12, %c0_13] : memref<1x32xf32, #tpu.memory_space<vmem>>, vector<1x32xf32>
    %cst_14 = arith.constant dense<0.000000e+00> : vector<1x2xf32>
    %16 = tpu.matmul %15, %14, %cst_14 {dimension_numbers = #tpu.dot_dimension_numbers<[1], [1], [0], [0], [0, 0, 1, 0], [], []>} : vector<1x32xf32>, vector<2x32xf32>, vector<1x2xf32> -> vector<1x2xf32>
    %c0_15 = arith.constant 0 : index
    %c0_16 = arith.constant 0 : index
    %17 = memref.load %arg7[%c0_15, %c0_16] : memref<1x1xf32, #tpu.memory_space<smem>>
    %18 = vector.broadcast %17 : f32 to vector<1x2xf32>
    %19 = arith.addf %16, %18 : vector<1x2xf32>
    %c0_17 = arith.constant 0 : index
    %c0_18 = arith.constant 0 : index
    %20 = vector.load %arg8[%c0_17, %c0_18] : memref<1x2xf32, #tpu.memory_space<vmem>>, vector<1x2xf32>
    tpu.vector_store %arg8[%c0_17, %c0_18], %19 {strides = array<i32>} : memref<1x2xf32, #tpu.memory_space<vmem>>, vector<1x2xf32>,
    return
  }
  func.func @transform_0(%arg0: i32) -> (i32, i32) {
    %c0_i32 = arith.constant 0 : i32
    %c0_i32_0 = arith.constant 0 : i32
    return %arg0, %c0_i32 : i32, i32
  }
  func.func @transform_1(%arg0: i32) -> (i32, i32) {
    %c0_i32 = arith.constant 0 : i32
    %c0_i32_0 = arith.constant 0 : i32
    %c0_i32_1 = arith.constant 0 : i32
    return %c0_i32, %c0_i32_0 : i32, i32
  }
  func.func @transform_2(%arg0: i32) -> (i32, i32) {
    %c0_i32 = arith.constant 0 : i32
    %c0_i32_0 = arith.constant 0 : i32
    %c0_i32_1 = arith.constant 0 : i32
    return %c0_i32, %c0_i32_0 : i32, i32
  }
  func.func @transform_3(%arg0: i32) -> (i32, i32) {
    %c0_i32 = arith.constant 0 : i32
    %c0_i32_0 = arith.constant 0 : i32
    %c0_i32_1 = arith.constant 0 : i32
    return %c0_i32, %c0_i32_0 : i32, i32
  }
  func.func @transform_4(%arg0: i32) -> (i32, i32) {
    %c0_i32 = arith.constant 0 : i32
    %c0_i32_0 = arith.constant 0 : i32
    %c0_i32_1 = arith.constant 0 : i32
    return %c0_i32, %c0_i32_0 : i32, i32
  }
  func.func @transform_5(%arg0: i32) -> (i32, i32) {
    %c0_i32 = arith.constant 0 : i32
    %c0_i32_0 = arith.constant 0 : i32
    %c0_i32_1 = arith.constant 0 : i32
    return %c0_i32, %c0_i32_0 : i32, i32
  }
  func.func @transform_6(%arg0: i32) -> (i32, i32) {
    %c0_i32 = arith.constant 0 : i32
    %c0_i32_0 = arith.constant 0 : i32
    %c0_i32_1 = arith.constant 0 : i32
    return %c0_i32, %c0_i32_0 : i32, i32
  }
  func.func @transform_7(%arg0: i32) -> (i32, i32) {
    %c0_i32 = arith.constant 0 : i32
    %c0_i32_0 = arith.constant 0 : i32
    return %c0_i32, %arg0 : i32, i32
  }
}

</mosaic_0001>

<llo_original>
// kernel: tpu_custom_call.1
$region0: #{tpu_custom_call.1}
  #allocation0 [shape = 'u32[]', space=smem, size = 0x4, offset = 0x4, fixed_abs, tag = 'smem constant byte address 0x4 - core index']
  #allocation1 [shape = 'u32[144,128]{1,0:T(1,128)}', space=vmem, size = 0x12000, scoped, tag = 'internal scratch']
  #allocation2 [shape = 'f32[1,1]{1,0:T(1,128)S(6)}', space=smem, size = 0x200, scoped, tag = 'scoped memory for tpu_custom_call.1']
  %s0 = inlined_call_operand.vmem [shape: f32[2,16], index: 0, kind: input, shape index: {}]
  %s1 = inlined_call_operand.hbm [shape: f32[16,32], index: 1, kind: input, shape index: {}]
  %s2 = inlined_call_operand.vmem [shape: f32[1,32], index: 2, kind: input, shape index: {}]
  %s3 = inlined_call_operand.hbm [shape: f32[32,32], index: 3, kind: input, shape index: {}]
  %s4 = inlined_call_operand.vmem [shape: f32[1,32], index: 4, kind: input, shape index: {}]
  %s5 = inlined_call_operand.vmem [shape: f32[1,32], index: 5, kind: input, shape index: {}]
  %s6 = inlined_call_operand.<no memory space> [shape: f32[1,1], index: 6, kind: input, shape index: {}]
  %s7 = inlined_call_operand.hbm [shape: f32[1,2], index: 7, kind: output, shape index: {}]
  %s8 = sld [smem:[#allocation0]]
  $region46: #{tpu_custom_call.1} parent=0
    _
  %s10 = ssub.s32 1, %s8
  %s11 = scalar_select 0, %s10, %s8
  %12 = sst [smem:[#allocation2]] %s6
  $region1: #{tpu_custom_call.1} parent=0
    #allocation3 [shape = 'u8[8192]{0}', space=vmem, size = 0x2000, scoped, tag = 'input window, operand 1, single buffered']
    #allocation4 [shape = 's32[1]{0}', space=sflag, size = 0x4, scoped, tag = 'scoped memory for tpu_custom_call.1']
    #allocation5 [shape = 's32[1]{0}', space=sflag, size = 0x4, scoped, tag = 'scoped memory for tpu_custom_call.1']
    #allocation6 [shape = 'u8[16384]{0}', space=vmem, size = 0x4000, scoped, tag = 'input window, operand 3, single buffered']
    #allocation7 [shape = 's32[1]{0}', space=sflag, size = 0x4, scoped, tag = 'scoped memory for tpu_custom_call.1']
    #allocation8 [shape = 'u8[512]{0}', space=vmem, size = 0x400, scoped, tag = 'output window, operand 0, single buffered']
    %13 = vsyncpa [#allocation4], 0
    %14 = vsyncpa [#allocation7], 0
    %15 = vsyncpa [#allocation5], 0
    // Predicated region
    $region2: #{tpu_custom_call.1} parent=1 // pred_check
      _
    $region3: #{tpu_custom_call.1} parent=1 // pred_check_branch
      %17 = sbr.rel (0) target = $region5
    $region4: #{tpu_custom_call.1} parent=1 // pred_region
      _
    $region5: #{tpu_custom_call.1} parent=1 // pred_fallthru
      _
    // Predicated region
    $region6: #{tpu_custom_call.1} parent=1 // pred_check
      _
    $region7: #{tpu_custom_call.1} parent=1 // pred_check_branch
      %19 = sbr.rel (0) target = $region9
    $region8: #{tpu_custom_call.1} parent=1 // pred_region
      %s21 = ssub.s32 256, 256
      %22 = vsyncadd [#allocation4], %s21
      %s23 = sshll.u32 [#allocation3], 4
      %s24 = int_to_ptr.vmem [resolvable:$true] %s23
      %29 = dma.hbm_to_vmem [thread:$0]  %s1, 256, %s24, [#allocation4], 128, 128, 8
    $region9: #{tpu_custom_call.1} parent=1 // pred_fallthru
      _
    // Predicated region
    $region10: #{tpu_custom_call.1} parent=1 // pred_check
      _
    $region11: #{tpu_custom_call.1} parent=1 // pred_check_branch
      %31 = sbr.rel (0) target = $region13
    $region12: #{tpu_custom_call.1} parent=1 // pred_region
      _
    $region13: #{tpu_custom_call.1} parent=1 // pred_fallthru
      _
    // Predicated region
    $region14: #{tpu_custom_call.1} parent=1 // pred_check
      _
    $region15: #{tpu_custom_call.1} parent=1 // pred_check_branch
      %33 = sbr.rel (0) target = $region17
    $region16: #{tpu_custom_call.1} parent=1 // pred_region
      %s35 = ssub.s32 512, 512
      %36 = vsyncadd [#allocation7], %s35
      %s37 = sshll.u32 [#allocation6], 4
      %s38 = int_to_ptr.vmem [resolvable:$true] %s37
      %43 = dma.hbm_to_vmem [thread:$0]  %s3, 512, %s38, [#allocation7], 128, 128, 8
    $region17: #{tpu_custom_call.1} parent=1 // pred_fallthru
      _
    // Predicated region
    $region18: #{tpu_custom_call.1} parent=1 // pred_check
      _
    $region19: #{tpu_custom_call.1} parent=1 // pred_check_branch
      %45 = sbr.rel (0) target = $region21
    $region20: #{tpu_custom_call.1} parent=1 // pred_region
      _
    $region21: #{tpu_custom_call.1} parent=1 // pred_fallthru
      _
    // Predicated region
    $region22: #{tpu_custom_call.1} parent=1 // pred_check
      _
    $region23: #{tpu_custom_call.1} parent=1 // pred_check_branch
      %47 = sbr.rel (0) target = $region25
    $region24: #{tpu_custom_call.1} parent=1 // pred_region
      _
    $region25: #{tpu_custom_call.1} parent=1 // pred_fallthru
      _
    // Predicated region
    $region26: #{tpu_custom_call.1} parent=1 // pred_check
      _
    $region27: #{tpu_custom_call.1} parent=1 // pred_check_branch
      %49 = sbr.rel (0) target = $region29
    $region28: #{tpu_custom_call.1} parent=1 // pred_region
      _
    $region29: #{tpu_custom_call.1} parent=1 // pred_fallthru
      _
    // Predicated region
    $region30: #{tpu_custom_call.1} parent=1 // pred_check
      _
    $region31: #{tpu_custom_call.1} parent=1 // pred_check_branch
      %51 = sbr.rel (0) target = $region33
    $region32: #{tpu_custom_call.1} parent=1 // pred_region
      %52 = dma.done [#allocation4], 256
    $region33: #{tpu_custom_call.1} parent=1 // pred_fallthru
      _
    // Predicated region
    $region34: #{tpu_custom_call.1} parent=1 // pred_check
      _
    $region35: #{tpu_custom_call.1} parent=1 // pred_check_branch
      %54 = sbr.rel (0) target = $region37
    $region36: #{tpu_custom_call.1} parent=1 // pred_region
      %55 = dma.done [#allocation7], 512
    $region37: #{tpu_custom_call.1} parent=1 // pred_fallthru
      _
    %v56 = vld [vmem:[%s0] sm:$0x3]
    %v57 = vld [vmem:[#allocation3] sm:$0xff]
    %v58 = vld [vmem:[#allocation3 + $0x8] sm:$0xff]
    %v59 = vld [vmem:[%s2] sm:$0x1]
    %v61 = vlaneseq
    %v62 = vshrl.u32 %v61, 7
    %v63 = vsub.s32 0, %v62
    %v64 = vrot.slane %v59, %v63
    %vm66 = vcmask 130048
    %v68 = vsel %vm66, %v56, 0
    %70 = vmatprep.subr.mxu0 0.0
    %71 = vmatpush1.msra.mxu0 %v57
    %72 = vmatprep.subr.mxu0 0.0
    %73 = vmatpush1.msra.mxu0 %v58
    %74 = vmatprep.subr.mxu0 0.0
    %75 = vmatpush1.msra.mxu0 0.0
    %76 = vmatprep.subr.mxu0 0.0
    %77 = vmatpush1.msra.mxu0 0.0
    %78 = vmatprep.subr.mxu0 0.0
    %79 = vmatpush1.msra.mxu0 0.0
    %80 = vmatprep.subr.mxu0 0.0
    %81 = vmatpush1.msra.mxu0 0.0
    %82 = vmatprep.subr.mxu0 0.0
    %83 = vmatpush1.msra.mxu0 0.0
    %84 = vmatprep.subr.mxu0 0.0
    %85 = vmatpush1.msra.mxu0 0.0
    %86 = vmatprep.subr.mxu0 0.0
    %87 = vmatpush1.msra.mxu0 0.0
    %88 = vmatprep.subr.mxu0 0.0
    %89 = vmatpush1.msra.mxu0 0.0
    %90 = vmatprep.subr.mxu0 0.0
    %91 = vmatpush1.msra.mxu0 0.0
    %92 = vmatprep.subr.mxu0 0.0
    %93 = vmatpush1.msra.mxu0 0.0
    %94 = vmatprep.subr.mxu0 0.0
    %95 = vmatpush1.msra.mxu0 0.0
    %96 = vmatprep.subr.mxu0 0.0
    %97 = vmatpush1.msra.mxu0 0.0
    %98 = vmatprep.subr.mxu0 0.0
    %99 = vmatpush1.msra.mxu0 0.0
    %100 = vmatprep.subr.mxu0 0.0
    %101 = vmatpush1.msra.mxu0 0.0
    %102 = vmatprep.subr.mxu0 0.0
    %103 = vmatpush1.msra.mxu0 0.0
    %104 = vmatprep.subr.mxu0 0.0
    %105 = vmatpush1.msra.mxu0 0.0
    %106 = vmatprep.subr.mxu0 0.0
    %107 = vmatpush1.msra.mxu0 0.0
    %108 = vmatprep.subr.mxu0 0.0
    %109 = vmatpush1.msra.mxu0 0.0
    %110 = vmatprep.subr.mxu0 0.0
    %111 = vmatpush1.msra.mxu0 0.0
    %112 = vmatprep.subr.mxu0 0.0
    %113 = vmatpush1.msra.mxu0 0.0
    %114 = vmatprep.subr.mxu0 0.0
    %115 = vmatpush1.msra.mxu0 0.0
    %116 = vmatprep.subr.mxu0 0.0
    %117 = vmatpush1.msra.mxu0 0.0
    %118 = vmatprep.subr.mxu0 0.0
    %119 = vmatpush1.msra.mxu0 0.0
    %120 = vmatprep.subr.mxu0 0.0
    %121 = vmatpush1.msra.mxu0 0.0
    %122 = vmatprep.subr.mxu0 0.0
    %123 = vmatpush1.msra.mxu0 0.0
    %124 = vmatprep.subr.mxu0 0.0
    %125 = vmatpush1.msra.mxu0 0.0
    %126 = vmatprep.subr.mxu0 0.0
    %127 = vmatpush1.msra.mxu0 0.0
    %128 = vmatprep.subr.mxu0 0.0
    %129 = vmatpush1.msra.mxu0 0.0
    %130 = vmatprep.subr.mxu0 0.0
    %131 = vmatpush1.msra.mxu0 0.0
    %132 = vmatprep.subr.mxu0 0.0
    %133 = vmatpush1.msra.mxu0 0.0
    %134 = vmatprep.mubr.f32.mxu0 0.0
    %135 = vmatmul.mubr.f32.gmra.mrb[0].mxu0 %v68
    %v136 = vpop.f32.mrb[0].mxu0
    %v137 = vadd.f32 %v64, %v136
    %v138 = vpop.f32.mrb[0].mxu0
    %139 = vdwg.mxu0
    %v140 = vmax.f32 %v137, 0.0
    %v141 = vld [vmem:[#allocation6] sm:$0xff]
    %v142 = vld [vmem:[#allocation6 + $0x8] sm:$0xff]
    %v143 = vld [vmem:[#allocation6 + $0x10] sm:$0xff]
    %v144 = vld [vmem:[#allocation6 + $0x18] sm:$0xff]
    %v145 = vld [vmem:[%s4] sm:$0x1]
    %v147 = vlaneseq
    %v148 = vshrl.u32 %v147, 7
    %v149 = vsub.s32 0, %v148
    %v150 = vrot.slane %v145, %v149
    %vm152 = vcmask 261120
    %v154 = vsel %vm152, %v140, 0
    %156 = vmatprep.subr.mxu0 0.0
    %157 = vmatpush1.msra.mxu0 %v141
    %158 = vmatprep.subr.mxu0 0.0
    %159 = vmatpush1.msra.mxu0 %v142
    %160 = vmatprep.subr.mxu0 0.0
    %161 = vmatpush1.msra.mxu0 %v143
    %162 = vmatprep.subr.mxu0 0.0
    %163 = vmatpush1.msra.mxu0 %v144
    %164 = vmatprep.subr.mxu0 0.0
    %165 = vmatpush1.msra.mxu0 0.0
    %166 = vmatprep.subr.mxu0 0.0
    %167 = vmatpush1.msra.mxu0 0.0
    %168 = vmatprep.subr.mxu0 0.0
    %169 = vmatpush1.msra.mxu0 0.0
    %170 = vmatprep.subr.mxu0 0.0
    %171 = vmatpush1.msra.mxu0 0.0
    %172 = vmatprep.subr.mxu0 0.0
    %173 = vmatpush1.msra.mxu0 0.0
    %174 = vmatprep.subr.mxu0 0.0
    %175 = vmatpush1.msra.mxu0 0.0
    %176 = vmatprep.subr.mxu0 0.0
    %177 = vmatpush1.msra.mxu0 0.0
    %178 = vmatprep.subr.mxu0 0.0
    %179 = vmatpush1.msra.mxu0 0.0
    %180 = vmatprep.subr.mxu0 0.0
    %181 = vmatpush1.msra.mxu0 0.0
    %182 = vmatprep.subr.mxu0 0.0
    %183 = vmatpush1.msra.mxu0 0.0
    %184 = vmatprep.subr.mxu0 0.0
    %185 = vmatpush1.msra.mxu0 0.0
    %186 = vmatprep.subr.mxu0 0.0
    %187 = vmatpush1.msra.mxu0 0.0
    %188 = vmatprep.subr.mxu0 0.0
    %189 = vmatpush1.msra.mxu0 0.0
    %190 = vmatprep.subr.mxu0 0.0
    %191 = vmatpush1.msra.mxu0 0.0
    %192 = vmatprep.subr.mxu0 0.0
    %193 = vmatpush1.msra.mxu0 0.0
    %194 = vmatprep.subr.mxu0 0.0
    %195 = vmatpush1.msra.mxu0 0.0
    %196 = vmatprep.subr.mxu0 0.0
    %197 = vmatpush1.msra.mxu0 0.0
    %198 = vmatprep.subr.mxu0 0.0
    %199 = vmatpush1.msra.mxu0 0.0
    %200 = vmatprep.subr.mxu0 0.0
    %201 = vmatpush1.msra.mxu0 0.0
    %202 = vmatprep.subr.mxu0 0.0
    %203 = vmatpush1.msra.mxu0 0.0
    %204 = vmatprep.subr.mxu0 0.0
    %205 = vmatpush1.msra.mxu0 0.0
    %206 = vmatprep.subr.mxu0 0.0
    %207 = vmatpush1.msra.mxu0 0.0
    %208 = vmatprep.subr.mxu0 0.0
    %209 = vmatpush1.msra.mxu0 0.0
    %210 = vmatprep.subr.mxu0 0.0
    %211 = vmatpush1.msra.mxu0 0.0
    %212 = vmatprep.subr.mxu0 0.0
    %213 = vmatpush1.msra.mxu0 0.0
    %214 = vmatprep.subr.mxu0 0.0
    %215 = vmatpush1.msra.mxu0 0.0
    %216 = vmatprep.subr.mxu0 0.0
    %217 = vmatpush1.msra.mxu0 0.0
    %218 = vmatprep.subr.mxu0 0.0
    %219 = vmatpush1.msra.mxu0 0.0
    %220 = vmatprep.mubr.f32.mxu0 0.0
    %221 = vmatmul.mubr.f32.gmra.mrb[0].mxu0 %v154
    %v222 = vpop.f32.mrb[0].mxu0
    %v223 = vadd.f32 %v150, %v222
    %v224 = vpop.f32.mrb[0].mxu0
    %225 = vdwg.mxu0
    %v226 = vmax.f32 %v223, 0.0
    %v227 = vld [vmem:[%s5] sm:$0x1]
    %s228 = sld [smem:[#allocation2]]
    %v229 = vstv %s228
    %v231 = vsel %vm152, %v227, 0
    %v234 = vsel %vm152, %v226, 0
    %236 = vmatprep.subr.mxu0 0.0
    %237 = vmatpush1.xpose.msra.mxu0 %v234
    %238 = vmatprep.subr.mxu0 0.0
    %239 = vmatpush1.xpose.msra.mxu0 0.0
    %240 = vmatprep.subr.mxu0 0.0
    %241 = vmatpush1.xpose.msra.mxu0 0.0
    %242 = vmatprep.subr.mxu0 0.0
    %243 = vmatpush1.xpose.msra.mxu0 0.0
    %244 = vmatprep.subr.mxu0 0.0
    %245 = vmatpush1.xpose.msra.mxu0 0.0
    %246 = vmatprep.subr.mxu0 0.0
    %247 = vmatpush1.xpose.msra.mxu0 0.0
    %248 = vmatprep.subr.mxu0 0.0
    %249 = vmatpush1.xpose.msra.mxu0 0.0
    %250 = vmatprep.subr.mxu0 0.0
    %251 = vmatpush1.xpose.msra.mxu0 0.0
    %252 = vmatprep.subr.mxu0 0.0
    %253 = vmatpush1.xpose.msra.mxu0 0.0
    %254 = vmatprep.subr.mxu0 0.0
    %255 = vmatpush1.xpose.msra.mxu0 0.0
    %256 = vmatprep.subr.mxu0 0.0
    %257 = vmatpush1.xpose.msra.mxu0 0.0
    %258 = vmatprep.subr.mxu0 0.0
    %259 = vmatpush1.xpose.msra.mxu0 0.0
    %260 = vmatprep.subr.mxu0 0.0
    %261 = vmatpush1.xpose.msra.mxu0 0.0
    %262 = vmatprep.subr.mxu0 0.0
    %263 = vmatpush1.xpose.msra.mxu0 0.0
    %264 = vmatprep.subr.mxu0 0.0
    %265 = vmatpush1.xpose.msra.mxu0 0.0
    %266 = vmatprep.subr.mxu0 0.0
    %267 = vmatpush1.xpose.msra.mxu0 0.0
    %268 = vmatprep.subr.mxu0 0.0
    %269 = vmatpush1.xpose.msra.mxu0 0.0
    %270 = vmatprep.subr.mxu0 0.0
    %271 = vmatpush1.xpose.msra.mxu0 0.0
    %272 = vmatprep.subr.mxu0 0.0
    %273 = vmatpush1.xpose.msra.mxu0 0.0
    %274 = vmatprep.subr.mxu0 0.0
    %275 = vmatpush1.xpose.msra.mxu0 0.0
    %276 = vmatprep.subr.mxu0 0.0
    %277 = vmatpush1.xpose.msra.mxu0 0.0
    %278 = vmatprep.subr.mxu0 0.0
    %279 = vmatpush1.xpose.msra.mxu0 0.0
    %280 = vmatprep.subr.mxu0 0.0
    %281 = vmatpush1.xpose.msra.mxu0 0.0
    %282 = vmatprep.subr.mxu0 0.0
    %283 = vmatpush1.xpose.msra.mxu0 0.0
    %284 = vmatprep.subr.mxu0 0.0
    %285 = vmatpush1.xpose.msra.mxu0 0.0
    %286 = vmatprep.subr.mxu0 0.0
    %287 = vmatpush1.xpose.msra.mxu0 0.0
    %288 = vmatprep.subr.mxu0 0.0
    %289 = vmatpush1.xpose.msra.mxu0 0.0
    %290 = vmatprep.subr.mxu0 0.0
    %291 = vmatpush1.xpose.msra.mxu0 0.0
    %292 = vmatprep.subr.mxu0 0.0
    %293 = vmatpush1.xpose.msra.mxu0 0.0
    %294 = vmatprep.subr.mxu0 0.0
    %295 = vmatpush1.xpose.msra.mxu0 0.0
    %296 = vmatprep.subr.mxu0 0.0
    %297 = vmatpush1.xpose.msra.mxu0 0.0
    %298 = vmatprep.subr.mxu0 0.0
    %299 = vmatpush1.xpose.msra.mxu0 0.0
    %300 = vmatprep.mubr.f32.mxu0 0.0
    %301 = vmatmul.mubr.f32.gmra.mrb[0].mxu0 %v231
    %v302 = vpop.f32.mrb[0].mxu0
    %v303 = vadd.f32 %v229, %v302
    %v304 = vpop.f32.mrb[0].mxu0
    %305 = vdwg.mxu0
    %vm306 = vcmask 8192
    %307 = vst.msk [vmem:[#allocation8] sm:$0x1] %vm306, %v303
    // Predicated region
    $region38: #{tpu_custom_call.1} parent=1 // pred_check
      _
    $region39: #{tpu_custom_call.1} parent=1 // pred_check_branch
      %309 = sbr.rel (0) target = $region41
    $region40: #{tpu_custom_call.1} parent=1 // pred_region
      %s311 = ssub.s32 16, 16
      %312 = vsyncadd [#allocation5], %s311
      %s314 = sshll.u32 [#allocation8], 4
      %s315 = int_to_ptr.vmem [resolvable:$true] %s314
      %317 = dma.vmem_to_hbm [thread:$0]  %s315, 16, %s7, [#allocation5]
    $region41: #{tpu_custom_call.1} parent=1 // pred_fallthru
      _
    // Predicated region
    $region42: #{tpu_custom_call.1} parent=1 // pred_check
      _
    $region43: #{tpu_custom_call.1} parent=1 // pred_check_branch
      %319 = sbr.rel (0) target = $region45
    $region44: #{tpu_custom_call.1} parent=1 // pred_region
      %320 = dma.done [#allocation5], 16
    $region45: #{tpu_custom_call.1} parent=1 // pred_fallthru
      _
    %321 = vsyncpa [#allocation4], 1
    %322 = vsyncpa [#allocation7], 1
    %323 = vsyncpa [#allocation5], 1

</llo_original>
